<compile_context>
chip_gen: v6e
topology: v6e:2x2x1
jax: 0.10.0
libtpu: 0.0.40
codegen_flags: <defaults>
</compile_context>

<pallas_src>
import functools

import jax
import jax.numpy as jnp
from jax import lax
from jax.experimental import pallas as pl
from jax.experimental.pallas import tpu as pltpu

LANES = 128
SUB_ROWS = 512                      # rows per inner accumulation chunk
ACC_ROWS = 32                       # accumulator rows (breaks VALU dep chain)
TARGET_TILE_BYTES = 4 * 1024 * 1024  # per-buffer HBM->VMEM tile (double buffered)


def _round_down(v, m):
    return (v // m) * m


def _cdiv(a, b):
    return -(-a // b)


def _plan(rows, itemsize, block_rows, num_partials):
    """Return (tile_rows, sub_rows, acc_rows, num_partials, tiles_per_partial, n_tiles)."""
    if block_rows is None:
        block_rows = TARGET_TILE_BYTES // (LANES * itemsize)   # dtype-aware
    block_rows = max(SUB_ROWS, _round_down(int(block_rows), SUB_ROWS))

    if rows <= SUB_ROWS:
        # Single block equal to the full array dims (exempt from min-tile
        # alignment for every dtype); no masking, one grid step.
        acc = next((a for a in (32, 16, 8) if rows % a == 0), rows)
        return rows, rows, acc, 1, 1, 1

    # tile_rows <= rows and a multiple of 512 -> legal for f32/bf16/int8 and
    # cleanly divisible by SUB_ROWS / ACC_ROWS.
    tile_rows = min(block_rows, _round_down(rows, SUB_ROWS))
    n_tiles = _cdiv(rows, tile_rows)
    if num_partials is None:
        # Keep the 2-TensorCore split (v7x) whenever the odd-count dummy tile
        # wastes at most 1/8 of the HBM reads on single-core chips.
        num_partials = 2 if (n_tiles >= 2 and (n_tiles % 2 == 0 or n_tiles >= 8)) else 1
    num_partials = max(1, min(int(num_partials), n_tiles))
    tiles_per_partial = _cdiv(n_tiles, num_partials)
    return tile_rows, SUB_ROWS, ACC_ROWS, num_partials, tiles_per_partial, n_tiles


def _magnitude_kernel(x_ref, o_ref, *, penalty, rows, tile_rows, sub_rows,
                      acc_rows, tiles_per_partial, has_edge):
    """Accumulate |x| or x^2 of one (tile_rows, 128) tile into the resident
    (1, acc_rows, 128) output block of this partial."""
    c = pl.program_id(0)           # partial (TensorCore) index  -- "parallel"
    i = pl.program_id(1)           # row-tile walk               -- "arbitrary"

    @pl.when(i == 0)
    def _init():
        o_ref[...] = jnp.zeros_like(o_ref)

    global_tile = c * tiles_per_partial + i
    n_sub = tile_rows // sub_rows

    def accumulate(masked):
        part = jnp.zeros((acc_rows, LANES), jnp.float32)
        for s in range(n_sub):                       # static unrolled sub-chunks
            off = s * sub_rows
            chunk = x_ref[pl.ds(off, sub_rows), :].astype(jnp.float32)
            chunk = jnp.abs(chunk) if penalty == "l1" else chunk * chunk
            if masked:
                # Only edge tiles (partial last tile / megacore dummy tile).
                row = lax.broadcasted_iota(jnp.int32, chunk.shape, 0)
                valid = (global_tile * tile_rows + off + row) < rows
                chunk = jnp.where(valid, chunk, 0.0)
            part = part + jnp.sum(
                chunk.reshape(sub_rows // acc_rows, acc_rows, LANES), axis=0)
        o_ref[0] += part

    if has_edge:
        is_edge = (global_tile + 1) * tile_rows > rows

        @pl.when(jnp.logical_not(is_edge))
        def _full_tile():
            accumulate(False)

        @pl.when(is_edge)
        def _edge_tile():
            accumulate(True)
    else:
        accumulate(False)


def magnitude_loss(x, penalty="l1", *, block_rows=None, num_partials=None):
    """mean(|x|) for penalty='l1' or mean(x^2) for penalty='l2' (float32)."""
    if penalty not in ("l1", "l2"):
        raise ValueError(f"Unknown penalty type: {penalty}")

    n_elems = x.size
    flat = x.reshape(-1)                       # pure reshape, no copy
    itemsize = jnp.dtype(x.dtype).itemsize

    rows = n_elems // LANES
    bulk = rows * LANES
    total = jnp.float32(0.0)

    if rows > 0:
        if bulk == n_elems:
            x2d = flat.reshape(rows, LANES)            # free reshape
        else:
            # TODO(synk): for sizes not a multiple of 128 this slice costs one
            # extra HBM pass over the bulk; a 1-D BlockSpec with in-kernel
            # element masking would remove it.
            x2d = flat[:bulk].reshape(rows, LANES)

        tile_rows, sub_rows, acc_rows, nparts, tpp, n_tiles = _plan(
            rows, itemsize, block_rows, num_partials)
        has_edge = nparts * tpp * tile_rows > rows

        kernel = functools.partial(
            _magnitude_kernel, penalty=penalty, rows=rows, tile_rows=tile_rows,
            sub_rows=sub_rows, acc_rows=acc_rows, tiles_per_partial=tpp,
            has_edge=has_edge)

        tile_bytes = tile_rows * LANES * itemsize
        vmem_limit = int(max(32 * 1024 * 1024, 2 * tile_bytes + 8 * 1024 * 1024))
        cost = pl.CostEstimate(
            flops=2 * bulk, transcendentals=0,
            bytes_accessed=bulk * itemsize + nparts * acc_rows * LANES * 4)

        partials = pl.pallas_call(
            kernel,
            out_shape=jax.ShapeDtypeStruct((nparts, acc_rows, LANES), jnp.float32),
            grid_spec=pltpu.PrefetchScalarGridSpec(
                num_scalar_prefetch=0,
                grid=(nparts, tpp),
                in_specs=[
                    # Clamp so the megacore dummy tile (odd tile counts) never
                    # produces a fully out-of-bounds block index; the edge mask
                    # zeroes its contribution in-kernel.
                    pl.BlockSpec(
                        (tile_rows, LANES),
                        lambda c, i: (jnp.minimum(c * tpp + i, n_tiles - 1), 0)),
                ],
                out_specs=pl.BlockSpec(
                    (1, acc_rows, LANES), lambda c, i: (c, 0, 0)),
            ),
            compiler_params=pltpu.CompilerParams(
                dimension_semantics=("parallel", "arbitrary"),
                vmem_limit_bytes=vmem_limit),
            cost_estimate=cost,
        )(x2d)

        total = total + jnp.sum(partials, dtype=jnp.float32)

    if bulk != n_elems:
        # Ragged remainder (< 128 elements): tiny plain-JAX reduction.
        tail = flat[bulk:].astype(jnp.float32)
        if penalty == "l1":
            total = total + jnp.sum(jnp.abs(tail))
        else:
            total = total + jnp.sum(tail * tail)

    # Mean over the ORIGINAL element count.
    return (total / jnp.float32(n_elems)).astype(jnp.float32)


if __name__ == "__main__":
    key = jax.random.PRNGKey(0)
    ks = jax.random.split(key, 5)

    def ref_loss(v, pen):
        vf = v.astype(jnp.float32)
        return jnp.mean(jnp.abs(vf)) if pen == "l1" else jnp.mean(vf * vf)

    cases = [
        # Spec-shaped NCHW feature map (batch=2, channels=4, 16x16 spatial).
        (jax.random.normal(ks[0], (2, 4, 16, 16), dtype=jnp.float32), {}),
        # Ragged total size (not a multiple of 128): exercises the JAX tail.
        (jax.random.normal(ks[1], (3, 5, 7, 11), dtype=jnp.float32), {}),
        # Multi-tile, odd tile count < 8 -> single partial, masked last tile.
        (jax.random.normal(ks[2], (2600, 128), dtype=jnp.float32),
         {"block_rows": 1024}),
        # Even tile count -> two partials; bf16 streaming, full tiles only.
        (jax.random.normal(ks[3], (2048 * 128,), dtype=jnp.float32)
         .astype(jnp.bfloat16), {"block_rows": 512}),
        # Odd tile count >= 8 -> two partials with one clamped/masked dummy tile.
        (jax.random.normal(ks[4], (4196, 128), dtype=jnp.float32),
         {"block_rows": 512}),
    ]

    for xin, kw in cases:
        for pen in ("l1", "l2"):
            out = jax.block_until_ready(magnitude_loss(xin, penalty=pen, **kw))
            ref = ref_loss(xin, pen)
            assert jnp.allclose(out, ref, rtol=1e-4, atol=1e-6), (
                xin.shape, xin.dtype, pen, out, ref)

    print("KERNEL_OK")
</pallas_src>

<mosaic_0001>
module attributes {stable_mosaic.version = 11 : i64} {
  func.func @_magnitude_kernel(%arg0: i32, %arg1: i32, %arg2: memref<16x128xf32, #tpu.memory_space<vmem>>, %arg3: memref<1x16x128xf32, #tpu.memory_space<vmem>>) attributes {dimension_semantics = [#tpu.dimension_semantics<parallel>, #tpu.dimension_semantics<arbitrary>], iteration_bounds = array<i64: 1, 1>, scalar_prefetch = 0 : i64, scratch_operands = 0 : i64, tpu.core_type = #tpu.core_type<tc>, window_params = [{transform_indices = @transform_0, window_bounds = array<i64: 16, 128>}, {transform_indices = @transform_1, window_bounds = array<i64: 1, 16, 128>}]} {
    %c0_i32 = arith.constant 0 : i32
    %0 = arith.cmpi eq, %arg1, %c0_i32 : i32
    %1 = arith.extui %0 : i1 to i32
    %c0_i32_0 = arith.constant 0 : i32
    %2 = arith.cmpi ne, %1, %c0_i32_0 : i32
    scf.if %2 {
      %cst_9 = arith.constant 0.000000e+00 : f32
      %15 = vector.broadcast %cst_9 : f32 to vector<1x16x128xf32>
      %c0_10 = arith.constant 0 : index
      %c0_11 = arith.constant 0 : index
      %c0_12 = arith.constant 0 : index
      %16 = vector.load %arg3[%c0_10, %c0_11, %c0_12] : memref<1x16x128xf32, #tpu.memory_space<vmem>>, vector<1x16x128xf32>
      tpu.vector_store %arg3[%c0_10, %c0_11, %c0_12], %15 {strides = array<i32>} : memref<1x16x128xf32, #tpu.memory_space<vmem>>, vector<1x16x128xf32>,
    } else {
    }
    %cst = arith.constant 0.000000e+00 : f32
    %3 = vector.broadcast %cst : f32 to vector<16x128xf32>
    %c0 = arith.constant 0 : index
    %c0_1 = arith.constant 0 : index
    %4 = vector.load %arg2[%c0, %c0_1] : memref<16x128xf32, #tpu.memory_space<vmem>>, vector<16x128xf32>
    %5 = math.absf %4 : vector<16x128xf32>
    %6 = vector.shape_cast %5 : vector<16x128xf32> to vector<1x16x128xf32>
    %cst_2 = arith.constant dense<0.000000e+00> : vector<16x128xf32>
    %7 = vector.multi_reduction <add>, %6, %cst_2 [0] : vector<1x16x128xf32> to vector<16x128xf32>
    %8 = arith.addf %3, %7 : vector<16x128xf32>
    %c0_3 = arith.constant 0 : index
    %c0_4 = arith.constant 0 : index
    %c0_5 = arith.constant 0 : index
    %9 = vector.load %arg3[%c0_3, %c0_4, %c0_5] : memref<1x16x128xf32, #tpu.memory_space<vmem>>, vector<1x16x128xf32>
    %10 = vector.shape_cast %9 : vector<1x16x128xf32> to vector<16x128xf32>
    %11 = arith.addf %10, %8 : vector<16x128xf32>
    %c0_6 = arith.constant 0 : index
    %c0_7 = arith.constant 0 : index
    %c0_8 = arith.constant 0 : index
    %12 = vector.load %arg3[%c0_6, %c0_7, %c0_8] : memref<1x16x128xf32, #tpu.memory_space<vmem>>, vector<1x16x128xf32>
    %13 = vector.shape_cast %12 : vector<1x16x128xf32> to vector<16x128xf32>
    %14 = vector.shape_cast %11 : vector<16x128xf32> to vector<1x16x128xf32>
    tpu.vector_store %arg3[%c0_6, %c0_7, %c0_8], %14 {strides = array<i32>} : memref<1x16x128xf32, #tpu.memory_space<vmem>>, vector<1x16x128xf32>,
    return
  }
  func.func @transform_0(%arg0: i32, %arg1: i32) -> (i32, i32) {
    %c1_i32 = arith.constant 1 : i32
    %0 = arith.muli %arg0, %c1_i32 : i32
    %1 = arith.addi %0, %arg1 : i32
    %c0_i32 = arith.constant 0 : i32
    %2 = arith.minsi %1, %c0_i32 : i32
    %c0_i32_0 = arith.constant 0 : i32
    %c0_i32_1 = arith.constant 0 : i32
    return %2, %c0_i32_0 : i32, i32
  }
  func.func @transform_1(%arg0: i32, %arg1: i32) -> (i32, i32, i32) {
    %c0_i32 = arith.constant 0 : i32
    %c0_i32_0 = arith.constant 0 : i32
    %c0_i32_1 = arith.constant 0 : i32
    return %arg0, %c0_i32, %c0_i32_0 : i32, i32, i32
  }
}

</mosaic_0001>

<llo_original>
// kernel: tpu_custom_call.1
$region0: #{tpu_custom_call.1}
  #allocation0 [shape = 'u32[]', space=smem, size = 0x4, offset = 0x4, fixed_abs, tag = 'smem constant byte address 0x4 - core index']
  #allocation1 [shape = 'u32[144,128]{1,0:T(1,128)}', space=vmem, size = 0x12000, scoped, tag = 'internal scratch']
  %s0 = inlined_call_operand.hbm [shape: f32[16,128], index: 0, kind: input, shape index: {}]
  %s1 = inlined_call_operand.hbm [shape: f32[1,16,128], index: 1, kind: output, shape index: {}]
  %s2 = sld [smem:[#allocation0]]
  $region22: #{tpu_custom_call.1} parent=0
    _
  %s4 = ssub.s32 1, %s2
  %s5 = scalar_select 0, %s4, %s2
  $region1: #{tpu_custom_call.1} parent=0
    #allocation2 [shape = 'u8[8192]{0}', space=vmem, size = 0x2000, scoped, tag = 'input window, operand 0, single buffered']
    #allocation3 [shape = 's32[1]{0}', space=sflag, size = 0x4, scoped, tag = 'scoped memory for tpu_custom_call.1']
    #allocation4 [shape = 's32[1]{0}', space=sflag, size = 0x4, scoped, tag = 'scoped memory for tpu_custom_call.1']
    #allocation5 [shape = 'u8[8192]{0}', space=vmem, size = 0x2000, scoped, tag = 'output window, operand 0, single buffered']
    %6 = vsyncpa [#allocation3], 0
    %7 = vsyncpa [#allocation4], 0
    // Predicated region
    $region2: #{tpu_custom_call.1} parent=1 // pred_check
      _
    $region3: #{tpu_custom_call.1} parent=1 // pred_check_branch
      %9 = sbr.rel (0) target = $region5
    $region4: #{tpu_custom_call.1} parent=1 // pred_region
      %s10 = sadd.s32 0, 0
      %p11 = scmp.lt.s32.totalorder %s10, 0
      %s12 = scalar_select %p11, %s10, 0
      %s13 = smul.u32 2, %s12
      %s15 = ssub.s32 256, 256
      %16 = vsyncadd [#allocation3], %s15
      %s17 = smul.addr %s13, 128
      %s18 = scalar_lea.hbm %s0, %s17
      %s19 = sshll.u32 [#allocation2], 4
      %s20 = int_to_ptr.vmem [resolvable:$true] %s19
      %25 = dma.hbm_to_vmem [thread:$0]  %s18, 256, %s20, [#allocation3], 128, 128, 8
    $region5: #{tpu_custom_call.1} parent=1 // pred_fallthru
      _
    // Predicated region
    $region6: #{tpu_custom_call.1} parent=1 // pred_check
      _
    $region7: #{tpu_custom_call.1} parent=1 // pred_check_branch
      %27 = sbr.rel (0) target = $region9
    $region8: #{tpu_custom_call.1} parent=1 // pred_region
      %28 = dma.done [#allocation3], 256
    $region9: #{tpu_custom_call.1} parent=1 // pred_fallthru
      _
    %s29 = sadd.s32 0, 0
    %p30 = scmp.lt.s32.totalorder %s29, 0
    %s31 = scalar_select %p30, %s29, 0
    %s32 = smul.u32 2, %s31
    %p33 = scmp.eq.s32.totalorder 0, 0
    // Predicated region
    $region10: #{tpu_custom_call.1} parent=1 // pred_check
      %p34 = pneg %p33
    $region11: #{tpu_custom_call.1} parent=1 // pred_check_branch
      %36 = sbr.rel (%p34) target = $region13
    $region12: #{tpu_custom_call.1} parent=1 // pred_region
      %37 = vst [vmem:[#allocation5] sm:$0xff] 0.0
      %38 = vst [vmem:[#allocation5 + $0x8] sm:$0xff] 0.0
    $region13: #{tpu_custom_call.1} parent=1 // pred_fallthru
      _
    %v39 = vld [vmem:[#allocation2] sm:$0xff]
    %v40 = vld [vmem:[#allocation2 + $0x8] sm:$0xff]
    %v41 = vand.u32 2147483647, %v39
    %v42 = vand.u32 2147483647, %v40
    %v43 = vadd.f32 %v41, 0.0
    %v44 = vadd.f32 %v42, 0.0
    %v45 = vadd.f32 %v43, 0.0
    %v46 = vadd.f32 %v44, 0.0
    %v47 = vld [vmem:[#allocation5] sm:$0xff]
    %v48 = vld [vmem:[#allocation5 + $0x8] sm:$0xff]
    %v49 = vadd.f32 %v47, %v45
    %v50 = vadd.f32 %v48, %v46
    %51 = vst [vmem:[#allocation5] sm:$0xff] %v49
    %52 = vst [vmem:[#allocation5 + $0x8] sm:$0xff] %v50
    // Predicated region
    $region14: #{tpu_custom_call.1} parent=1 // pred_check
      _
    $region15: #{tpu_custom_call.1} parent=1 // pred_check_branch
      %54 = sbr.rel (0) target = $region17
    $region16: #{tpu_custom_call.1} parent=1 // pred_region
      %s56 = ssub.s32 256, 256
      %57 = vsyncadd [#allocation4], %s56
      %s58 = sshll.u32 [#allocation5], 4
      %s59 = int_to_ptr.vmem [resolvable:$true] %s58
      %64 = dma.vmem_to_hbm [thread:$0]  %s59, 256, %s1, [#allocation4], 128, 128, 8
    $region17: #{tpu_custom_call.1} parent=1 // pred_fallthru
      _
    // Predicated region
    $region18: #{tpu_custom_call.1} parent=1 // pred_check
      _
    $region19: #{tpu_custom_call.1} parent=1 // pred_check_branch
      %66 = sbr.rel (0) target = $region21
    $region20: #{tpu_custom_call.1} parent=1 // pred_region
      %67 = dma.done [#allocation4], 256
    $region21: #{tpu_custom_call.1} parent=1 // pred_fallthru
      _
    %68 = vsyncpa [#allocation3], 1
    %69 = vsyncpa [#allocation4], 1

</llo_original>
